<compile_context>
chip_gen: v6e
topology: v6e:2x2x1
jax: 0.10.0
libtpu: 0.0.40
codegen_flags: <defaults>
</compile_context>

<pallas_src>
import jax
import jax.numpy as jnp
from jax.experimental import pallas as pl
from jax.experimental.pallas import tpu as pltpu


# --------------------------------------------------------------------------- #
# Kernel
# --------------------------------------------------------------------------- #
def _add_pe_kernel(x_ref, pe_ref, o_ref):
    # x_ref : (ts, tb, D) tile of x
    # pe_ref: (ts, D) dense tile of the positional-encoding table
    pe = pe_ref[...].astype(o_ref.dtype)          # per-tile cast (free on VPU)
    o_ref[...] = x_ref[...] + pe[:, None, :]      # broadcast over batch sublanes


# --------------------------------------------------------------------------- #
# __init__-time buffer (identical math to the PyTorch module)
# --------------------------------------------------------------------------- #
def make_positional_encoding(d_model: int, max_len: int = 10000,
                             dtype=jnp.float32) -> jnp.ndarray:
    assert d_model % 2 == 0, "d_model must be even (same constraint as the PyTorch code)"
    position = jnp.arange(max_len, dtype=jnp.float32)[:, None]           # (max_len, 1)
    div_term = jnp.exp(jnp.arange(0, d_model, 2, dtype=jnp.float32)
                       * (-jnp.log(10000.0) / d_model))                  # (d_model//2,)
    angles = position * div_term                                         # (max_len, d_model//2)
    pe = jnp.zeros((max_len, d_model), dtype=jnp.float32)
    pe = pe.at[:, 0::2].set(jnp.sin(angles))
    pe = pe.at[:, 1::2].set(jnp.cos(angles))
    # unsqueeze(0).transpose(0,1) -> (max_len, 1, d_model); build in target dtype
    return pe[:, None, :].astype(dtype)


# --------------------------------------------------------------------------- #
# Tile / VMEM sizing helpers
# --------------------------------------------------------------------------- #
def _round_up(n: int, m: int) -> int:
    return ((n + m - 1) // m) * m


def _vmem_limit_bytes() -> int:
    """Scoped VMEM to request: ~5/8 of physical capacity, capped at 64 MiB.
    (v5e/v6e: 64 MiB of 128 MiB physical; v7x: 40 MiB of 64 MiB physical.)"""
    cap = 64 * 1024 * 1024                        # conservative default (v7x physical)
    try:
        cap = int(getattr(pltpu.get_tpu_info(), "vmem_capacity_bytes", cap))
    except Exception:
        pass
    return min((cap * 5) // 8, 64 * 1024 * 1024)


def _dimension_semantics():
    """Only CORE_PARALLEL actually shards grid steps across v7x's 2 TensorCores;
    plain "parallel" is a codegen no-op (and fine on single-TC v5e/v6e)."""
    try:
        kind = jax.devices()[0].device_kind.lower()
    except Exception:
        kind = ""
    if "v7" in kind and hasattr(pltpu, "CORE_PARALLEL"):
        return (pltpu.CORE_PARALLEL, pltpu.PARALLEL)
    return ("parallel", "parallel")


def _pick_tiles(S: int, B: int, D: int, x_itemsize: int, pe_itemsize: int,
                target_bytes: int):
    """Pick (ts, tb) so one copy of {x block + out block + pe block}, with real
    sublane/lane padding, fits in target_bytes.  Only called for S >= 8."""
    Dp = _round_up(D, 128)
    Bp = _round_up(B, 8)

    # Batch tile: keep the full batch unless even an 8-seq-row block would blow
    # the per-copy budget (huge B*D); then tile the batch in multiples of 8.
    tb = B
    min_block = 8 * (2 * Bp * Dp * x_itemsize) + 8 * Dp * pe_itemsize
    if B > 8 and min_block > target_bytes:
        per_group = 2 * 8 * 8 * Dp * x_itemsize          # x+out, 8 seq x 8 batch rows
        groups = max(1, target_bytes // max(per_group, 1))
        tb = max(8, min((B // 8) * 8, int(groups) * 8))

    # Sequence tile: as large as the budget allows, a multiple of 8 (sublane
    # alignment of the 2-D pe block), never larger than S.
    row = 2 * _round_up(tb, 8) * Dp * x_itemsize + Dp * pe_itemsize
    ts = target_bytes // max(row, 1)
    ts = max(8, (int(ts) // 8) * 8)
    ts = min(ts, max(8, (S // 8) * 8))
    # TODO(synk): an (8, 8, D) block can still exceed the budget for enormous D;
    # that path would additionally need a D grid axis.
    return int(ts), int(tb)


# --------------------------------------------------------------------------- #
# Forward
# --------------------------------------------------------------------------- #
def positional_encoding_forward(x: jnp.ndarray, pe: jnp.ndarray) -> jnp.ndarray:
    """x: (S, B, D) seq-first;  pe: (max_len, 1, D) buffer;  returns x + pe[:S]."""
    S, B, D = x.shape
    pe_rows = pe.shape[0]
    assert pe_rows >= S and pe.shape[-1] == D

    # Drop the unit batch dim of the buffer: free reshape, and gives the pe
    # BlockSpec a dense (ts, D) block (no 8x sublane padding, contiguous DMA).
    pe2d = pe.reshape(pe_rows, D)

    vmem_limit = _vmem_limit_bytes()
    target = vmem_limit // 5                      # single-copy per-step block budget

    if S < 8:
        # Tiny sequences: one full-extent block.  Slice pe to exactly S rows so
        # its block equals the full array dims (legal for any S); copy is < 8 rows.
        pe2d = pe2d[:S]
        ts, tb = S, B
    else:
        ts, tb = _pick_tiles(S, B, D, jnp.dtype(x.dtype).itemsize,
                             jnp.dtype(pe2d.dtype).itemsize, target)

    grid = (pl.cdiv(S, ts), pl.cdiv(B, tb))       # ragged tails masked by Pallas

    return pl.pallas_call(
        _add_pe_kernel,
        out_shape=jax.ShapeDtypeStruct((S, B, D), x.dtype),
        grid=grid,
        in_specs=[
            # x: (ts, tb, D) blocks marching over sequence (and batch if tiled).
            pl.BlockSpec((ts, tb, D), lambda i, j: (i, j, 0)),
            # pe: dense (ts, D) row blocks; only the first cdiv(S, ts) blocks of
            # the (max_len, D) buffer are ever DMA'd, re-used across batch tiles.
            pl.BlockSpec((ts, D), lambda i, j: (i, 0)),
        ],
        out_specs=pl.BlockSpec((ts, tb, D), lambda i, j: (i, j, 0)),
        compiler_params=pltpu.CompilerParams(
            dimension_semantics=_dimension_semantics(),
            vmem_limit_bytes=vmem_limit,
        ),
    )(x, pe2d)


# --------------------------------------------------------------------------- #
# Demo / self-test
# --------------------------------------------------------------------------- #
if __name__ == "__main__":
    key = jax.random.PRNGKey(0)

    # --- small demo shape consistent with the module (seq-first layout) ---
    seq_len, batch, d_model = 8, 2, 32
    max_len = 10000
    x = jax.random.normal(key, (seq_len, batch, d_model), dtype=jnp.float32)
    pe = make_positional_encoding(d_model, max_len=max_len)

    out = jax.block_until_ready(positional_encoding_forward(x, pe))
    ref = x + pe[:seq_len]
    assert out.shape == (seq_len, batch, d_model)
    assert jnp.allclose(out, ref, atol=1e-6), "mismatch vs reference (small shape)"

    # --- larger, lane-dense shape that exercises the tiled/pipelined path
    #     (D % 128 == 0, B % 8 == 0) ---
    S2, B2, D2 = 1056, 8, 128
    x2 = jax.random.normal(jax.random.PRNGKey(1), (S2, B2, D2), dtype=jnp.float32)
    pe2 = make_positional_encoding(D2, max_len=2048)
    out2 = jax.block_until_ready(positional_encoding_forward(x2, pe2))
    ref2 = x2 + pe2[:S2]
    assert jnp.allclose(out2, ref2, atol=1e-6), "mismatch vs reference (tiled shape)"

    print("KERNEL_OK")
</pallas_src>

<mosaic_0001>
module attributes {stable_mosaic.version = 11 : i64} {
  func.func @_add_pe_kernel(%arg0: i32, %arg1: i32, %arg2: memref<8x2x32xf32, #tpu.memory_space<vmem>>, %arg3: memref<8x32xf32, #tpu.memory_space<vmem>>, %arg4: memref<8x2x32xf32, #tpu.memory_space<vmem>>) attributes {dimension_semantics = [#tpu.dimension_semantics<parallel>, #tpu.dimension_semantics<parallel>], iteration_bounds = array<i64: 1, 1>, scalar_prefetch = 0 : i64, scratch_operands = 0 : i64, tpu.core_type = #tpu.core_type<tc>, window_params = [{transform_indices = @transform_0, window_bounds = array<i64: 8, 2, 32>}, {transform_indices = @transform_1, window_bounds = array<i64: 8, 32>}, {transform_indices = @transform_2, window_bounds = array<i64: 8, 2, 32>}]} {
    %c0 = arith.constant 0 : index
    %c0_0 = arith.constant 0 : index
    %0 = vector.load %arg3[%c0, %c0_0] : memref<8x32xf32, #tpu.memory_space<vmem>>, vector<8x32xf32>
    %c0_1 = arith.constant 0 : index
    %c0_2 = arith.constant 0 : index
    %c0_3 = arith.constant 0 : index
    %1 = vector.load %arg2[%c0_1, %c0_2, %c0_3] : memref<8x2x32xf32, #tpu.memory_space<vmem>>, vector<8x2x32xf32>
    %2 = vector.shape_cast %0 : vector<8x32xf32> to vector<8x1x32xf32>
    %3 = vector.broadcast %2 : vector<8x1x32xf32> to vector<8x2x32xf32>
    %4 = arith.addf %1, %3 : vector<8x2x32xf32>
    %c0_4 = arith.constant 0 : index
    %c0_5 = arith.constant 0 : index
    %c0_6 = arith.constant 0 : index
    %5 = vector.load %arg4[%c0_4, %c0_5, %c0_6] : memref<8x2x32xf32, #tpu.memory_space<vmem>>, vector<8x2x32xf32>
    tpu.vector_store %arg4[%c0_4, %c0_5, %c0_6], %4 {strides = array<i32>} : memref<8x2x32xf32, #tpu.memory_space<vmem>>, vector<8x2x32xf32>,
    return
  }
  func.func @transform_0(%arg0: i32, %arg1: i32) -> (i32, i32, i32) {
    %c0_i32 = arith.constant 0 : i32
    %c0_i32_0 = arith.constant 0 : i32
    return %arg0, %arg1, %c0_i32 : i32, i32, i32
  }
  func.func @transform_1(%arg0: i32, %arg1: i32) -> (i32, i32) {
    %c0_i32 = arith.constant 0 : i32
    %c0_i32_0 = arith.constant 0 : i32
    return %arg0, %c0_i32 : i32, i32
  }
  func.func @transform_2(%arg0: i32, %arg1: i32) -> (i32, i32, i32) {
    %c0_i32 = arith.constant 0 : i32
    %c0_i32_0 = arith.constant 0 : i32
    return %arg0, %arg1, %c0_i32 : i32, i32, i32
  }
}

</mosaic_0001>

<llo_original>
// kernel: tpu_custom_call.1
$region0: #{tpu_custom_call.1}
  #allocation0 [shape = 'u32[]', space=smem, size = 0x4, offset = 0x4, fixed_abs, tag = 'smem constant byte address 0x4 - core index']
  #allocation1 [shape = 'u32[144,128]{1,0:T(1,128)}', space=vmem, size = 0x12000, scoped, tag = 'internal scratch']
  %s0 = inlined_call_operand.vmem [shape: f32[8,2,32], index: 0, kind: input, shape index: {}]
  %s1 = inlined_call_operand.vmem [shape: f32[10000,32], index: 1, kind: input, shape index: {}]
  %s2 = inlined_call_operand.hbm [shape: f32[8,2,32], index: 2, kind: output, shape index: {}]
  %s3 = sld [smem:[#allocation0]]
  $region18: #{tpu_custom_call.1} parent=0
    _
  %s5 = ssub.s32 1, %s3
  %s6 = scalar_select 0, %s5, %s3
  $region1: #{tpu_custom_call.1} parent=0
    #allocation2 [shape = 'u8[8192]{0}', space=vmem, size = 0x2000, scoped, tag = 'output window, operand 0, single buffered']
    #allocation3 [shape = 's32[1]{0}', space=sflag, size = 0x4, scoped, tag = 'scoped memory for tpu_custom_call.1']
    %7 = vsyncpa [#allocation3], 0
    // Predicated region
    $region2: #{tpu_custom_call.1} parent=1 // pred_check
      _
    $region3: #{tpu_custom_call.1} parent=1 // pred_check_branch
      %9 = sbr.rel (0) target = $region5
    $region4: #{tpu_custom_call.1} parent=1 // pred_region
      _
    $region5: #{tpu_custom_call.1} parent=1 // pred_fallthru
      _
    // Predicated region
    $region6: #{tpu_custom_call.1} parent=1 // pred_check
      _
    $region7: #{tpu_custom_call.1} parent=1 // pred_check_branch
      %11 = sbr.rel (0) target = $region9
    $region8: #{tpu_custom_call.1} parent=1 // pred_region
      _
    $region9: #{tpu_custom_call.1} parent=1 // pred_fallthru
      _
    %v12 = vld [vmem:[%s1] sm:$0xff]
    %v13 = vld [vmem:[%s0] sm:$0x3]
    %v14 = vld [vmem:[%s0 + $0x2] sm:$0x3]
    %v15 = vld [vmem:[%s0 + $0x4] sm:$0x3]
    %v16 = vld [vmem:[%s0 + $0x6] sm:$0x3]
    %v17 = vld [vmem:[%s0 + $0x8] sm:$0x3]
    %v18 = vld [vmem:[%s0 + $0xa] sm:$0x3]
    %v19 = vld [vmem:[%s0 + $0xc] sm:$0x3]
    %v20 = vld [vmem:[%s0 + $0xe] sm:$0x3]
    %v22 = vcombine.high %v12, %v12
    %v24 = vunpack.c.l.s4 1966171168
    %v25 = vunpack.c.0.s8 %v24
    %v26 = vlaneseq
    %v27 = vshrl.u32 %v26, 7
    %v28 = vsub.s32 %v25, %v27
    %v29 = vrot.slane %v12, %v28
    %v31 = vunpack.c.l.s4 1966171168
    %v32 = vunpack.c.0.s8 %v31
    %v33 = vlaneseq
    %v34 = vshrl.u32 %v33, 7
    %v35 = vsub.s32 %v32, %v34
    %v36 = vrot.slane %v22, %v35
    %v37 = vcombine.high %v29, %v29
    %v38 = vcombine.high %v36, %v36
    %v40 = vunpack.c.l.s4 1966171168
    %v41 = vunpack.c.0.s8 %v40
    %v42 = vlaneseq
    %v43 = vshrl.u32 %v42, 7
    %v44 = vsub.s32 %v41, %v43
    %v45 = vrot.slane %v29, %v44
    %v47 = vunpack.c.l.s4 1966171168
    %v48 = vunpack.c.0.s8 %v47
    %v49 = vlaneseq
    %v50 = vshrl.u32 %v49, 7
    %v51 = vsub.s32 %v48, %v50
    %v52 = vrot.slane %v36, %v51
    %v54 = vunpack.c.l.s4 1966171168
    %v55 = vunpack.c.0.s8 %v54
    %v56 = vlaneseq
    %v57 = vshrl.u32 %v56, 7
    %v58 = vsub.s32 %v55, %v57
    %v59 = vrot.slane %v37, %v58
    %v61 = vunpack.c.l.s4 1966171168
    %v62 = vunpack.c.0.s8 %v61
    %v63 = vlaneseq
    %v64 = vshrl.u32 %v63, 7
    %v65 = vsub.s32 %v62, %v64
    %v66 = vrot.slane %v38, %v65
    %v67 = vcombine.high %v45, %v45
    %v68 = vcombine.high %v52, %v52
    %v69 = vcombine.high %v59, %v59
    %v70 = vcombine.high %v66, %v66
    %v71 = vlaneseq
    %v72 = vshrl.u32 %v71, 7
    %v73 = vsub.s32 0, %v72
    %v74 = vrot.slane %v45, %v73
    %v75 = vlaneseq
    %v76 = vshrl.u32 %v75, 7
    %v77 = vsub.s32 0, %v76
    %v78 = vrot.slane %v59, %v77
    %v79 = vlaneseq
    %v80 = vshrl.u32 %v79, 7
    %v81 = vsub.s32 0, %v80
    %v82 = vrot.slane %v67, %v81
    %v83 = vlaneseq
    %v84 = vshrl.u32 %v83, 7
    %v85 = vsub.s32 0, %v84
    %v86 = vrot.slane %v69, %v85
    %v87 = vlaneseq
    %v88 = vshrl.u32 %v87, 7
    %v89 = vsub.s32 0, %v88
    %v90 = vrot.slane %v52, %v89
    %v91 = vlaneseq
    %v92 = vshrl.u32 %v91, 7
    %v93 = vsub.s32 0, %v92
    %v94 = vrot.slane %v66, %v93
    %v95 = vlaneseq
    %v96 = vshrl.u32 %v95, 7
    %v97 = vsub.s32 0, %v96
    %v98 = vrot.slane %v68, %v97
    %v99 = vlaneseq
    %v100 = vshrl.u32 %v99, 7
    %v101 = vsub.s32 0, %v100
    %v102 = vrot.slane %v70, %v101
    %v111 = vadd.f32 %v13, %v74
    %v112 = vadd.f32 %v14, %v78
    %v113 = vadd.f32 %v15, %v82
    %v114 = vadd.f32 %v16, %v86
    %v115 = vadd.f32 %v17, %v90
    %v116 = vadd.f32 %v18, %v94
    %v117 = vadd.f32 %v19, %v98
    %v118 = vadd.f32 %v20, %v102
    %vm119 = vcmask 254976
    %120 = vst.msk [vmem:[#allocation2] sm:$0x3] %vm119, %v111
    %121 = vst.msk [vmem:[#allocation2 + $0x2] sm:$0x3] %vm119, %v112
    %122 = vst.msk [vmem:[#allocation2 + $0x4] sm:$0x3] %vm119, %v113
    %123 = vst.msk [vmem:[#allocation2 + $0x6] sm:$0x3] %vm119, %v114
    %124 = vst.msk [vmem:[#allocation2 + $0x8] sm:$0x3] %vm119, %v115
    %125 = vst.msk [vmem:[#allocation2 + $0xa] sm:$0x3] %vm119, %v116
    %126 = vst.msk [vmem:[#allocation2 + $0xc] sm:$0x3] %vm119, %v117
    %127 = vst.msk [vmem:[#allocation2 + $0xe] sm:$0x3] %vm119, %v118
    // Predicated region
    $region10: #{tpu_custom_call.1} parent=1 // pred_check
      _
    $region11: #{tpu_custom_call.1} parent=1 // pred_check_branch
      %129 = sbr.rel (0) target = $region13
    $region12: #{tpu_custom_call.1} parent=1 // pred_region
      %s131 = ssub.s32 256, 256
      %132 = vsyncadd [#allocation3], %s131
      %s133 = sshll.u32 [#allocation2], 4
      %s134 = int_to_ptr.vmem [resolvable:$true] %s133
      %139 = dma.vmem_to_hbm [thread:$0]  %s134, 256, %s2, [#allocation3], 32, 32, 2
    $region13: #{tpu_custom_call.1} parent=1 // pred_fallthru
      _
    // Predicated region
    $region14: #{tpu_custom_call.1} parent=1 // pred_check
      _
    $region15: #{tpu_custom_call.1} parent=1 // pred_check_branch
      %141 = sbr.rel (0) target = $region17
    $region16: #{tpu_custom_call.1} parent=1 // pred_region
      %142 = dma.done [#allocation3], 256
    $region17: #{tpu_custom_call.1} parent=1 // pred_fallthru
      _
    %143 = vsyncpa [#allocation3], 1

</llo_original>
